<compile_context>
chip_gen: v5e
topology: v5e:2x2
jax: 0.10.0
libtpu: 0.0.40
codegen_flags: <defaults>
</compile_context>

<pallas_src>
import functools

import jax
import jax.numpy as jnp
from jax import lax
from jax.experimental import pallas as pl
from jax.experimental.pallas import tpu as pltpu


def _cdiv(a, b):
    return (a + b - 1) // b


def _round_up(a, b):
    return _cdiv(a, b) * b


# ------------------------------- kernel --------------------------------------
def _border_mask_kernel(band_ref, lab_hbm, out_ref, halo_buf, halo_sem, *,
                        nclasses, border_size, kern_conn, background_class,
                        h_tile, halo, n_bands, h_pad, img_w):
    b = pl.program_id(0)          # batch element
    t = pl.program_id(1)          # H band
    w_pad = band_ref.shape[-1]

    full = jnp.uint32((1 << nclasses) - 1)
    zero = jnp.uint32(0)
    ones32 = jnp.uint32(0xFFFFFFFF)

    multi_band = n_bands > 1
    if multi_band:
        # Halo rows above/below this band, read straight from HBM.  Offsets are
        # clamped into range; the clamped (wrong) rows are only ever read for
        # the first/last band, where they are zeroed below anyway.
        top_src = jnp.clip(t * h_tile - halo, 0, h_pad - halo)
        bot_src = jnp.clip((t + 1) * h_tile, 0, h_pad - halo)
        cp_top = pltpu.make_async_copy(
            lab_hbm.at[b, pl.ds(top_src, halo), :], halo_buf.at[0],
            halo_sem.at[0])
        cp_bot = pltpu.make_async_copy(
            lab_hbm.at[b, pl.ds(bot_src, halo), :], halo_buf.at[1],
            halo_sem.at[1])
        cp_top.start()
        cp_bot.start()

    def to_bits(lab_raw):
        # bit c of bits[h,w] == 1  <=>  one-hot channel c of pixel (h,w) == 1
        lab = lab_raw.astype(jnp.int32)
        valid = (lab >= 0) & (lab < nclasses)      # one_hot gives zeros OOR
        shift = jnp.clip(lab, 0, nclasses - 1).astype(jnp.uint32)
        bits = jnp.where(valid, jnp.left_shift(jnp.uint32(1), shift), zero)
        if background_class is not None:
            # fold background into every class (all bits set at bg pixels)
            bits = jnp.where(lab == background_class, full, bits)
        return bits

    band_bits = to_bits(band_ref[...])                    # (h_tile, w_pad)

    if multi_band:
        cp_top.wait()
        cp_bot.wait()
        # Zero the halo at the true image top/bottom (== conv2d zero padding;
        # zero rows stay zero under erosion, so one zeroing suffices for all
        # border_size steps).
        top_keep = jnp.where(t > 0, ones32, zero)
        bot_keep = jnp.where(t < n_bands - 1, ones32, zero)
        top_bits = to_bits(halo_buf[0]) & top_keep
        bot_bits = to_bits(halo_buf[1]) & bot_keep
    else:
        top_bits = jnp.zeros((halo, w_pad), jnp.uint32)
        bot_bits = jnp.zeros((halo, w_pad), jnp.uint32)

    plane = jnp.concatenate([top_bits, band_bits, bot_bits], axis=0)
    rows = plane.shape[0]

    # Hoisted horizontal zero-padding masks (conv2d padding=1 along W).
    widx = lax.broadcasted_iota(jnp.int32, plane.shape, 1)
    m_wm1 = jnp.where(widx >= 1, full, zero)          # tap x[h, w-1]
    m_wp1 = jnp.where(widx < img_w - 1, full, zero)   # tap x[h, w+1]

    def hshift(x, dw, mask):
        return pltpu.roll(x, shift=(-dw) % w_pad, axis=1) & mask

    def vshift(x, dh):
        # Wrap garbage at tile edges only contaminates rows < border_size from
        # the tile edge; the halo (>= border_size rows) keeps the interior clean.
        return pltpu.roll(x, shift=(-dh) % rows, axis=0)

    # TODO(synk): if the v6e bundle dump shows the 2-wide XLU (vrot) slot
    # saturated, switch the vertical taps to sublane-shifted loads from a
    # zero-padded VMEM scratch plane (moves them onto the 3-wide vld slot).
    def erode_once(x):
        row = x & hshift(x, -1, m_wm1) & hshift(x, 1, m_wp1)
        if kern_conn == 8:
            # 3x3 box erosion is separable for AND.
            return row & vshift(row, -1) & vshift(row, 1)
        return row & vshift(x, -1) & vshift(x, 1)      # plus-shaped stencil

    for _ in range(border_size):   # small & static -> unrolled
        plane = erode_once(plane)

    eroded = plane[halo:halo + h_tile]                  # 8-aligned static slice

    # bodies: exactly one surviving class bit, OR surviving background bit.
    exactly_one = (eroded != zero) & ((eroded & (eroded - jnp.uint32(1))) == zero)
    bodies = exactly_one
    if background_class is not None:
        # Intended per-batch OR (PyTorch's `eroded_bodies + background_mask`
        # mis-broadcasts for batch > 1; matches PyTorch exactly for B == 1).
        bodies = bodies | ((eroded & jnp.uint32(1 << background_class)) != zero)

    out_ref[...] = jnp.where(bodies, 0.0, 1.0).astype(jnp.float32)


# ------------------------------- wrapper --------------------------------------
_PASSTHROUGH_DTYPES = (jnp.int8, jnp.uint8, jnp.int16, jnp.int32, jnp.uint32,
                       jnp.float32, jnp.bfloat16)


def _pick_h_tile(H, w_pad, B):
    # ~1 MiB f32 output tile, full W width, rows a multiple of 8.
    rows = (1 << 20) // (4 * w_pad)
    rows = max(8, (rows // 8) * 8)
    h_cap = _round_up(max(H, 8), 8)
    h_tile = min(rows, h_cap)
    if B == 1 and h_tile >= h_cap and H >= 16:
        # Split single-image planes into >= 2 bands so the band axis can shard
        # across TensorCores (v7x) and pipeline the f32 writeback.
        h_tile = max(8, _round_up(_cdiv(H, 2), 8))
    return h_tile


def border_mask(range_label, *, nclasses, border_size, kern_conn=4,
                background_class=None, h_tile=None):
    """Pallas equivalent of borderMask.forward (bit-packed, halo-tiled)."""
    assert kern_conn in (4, 8), f"unsupported kern_conn={kern_conn}"
    assert border_size >= 1
    assert 1 <= nclasses <= 32, "bit-packed kernel supports nclasses <= 32"
    if background_class is not None:
        assert 0 <= background_class < nclasses

    must_unbatch = range_label.ndim != 3
    if must_unbatch:
        range_label = range_label[None, ...]
    B, H, W = range_label.shape

    # Pass supported dtypes straight through (no wrapper-side HBM cast pass);
    # only exotic dtypes (int64/float64/bool/...) are widened here.
    if range_label.dtype not in {jnp.dtype(d) for d in _PASSTHROUGH_DTYPES}:
        range_label = range_label.astype(jnp.int32)

    w_pad = _round_up(max(W, 128), 128)          # lane-dense stores
    halo = _round_up(border_size, 8)             # halo rows per side (>= bsz)

    if h_tile is None:
        h_tile = _pick_h_tile(H, w_pad, B)
    h_tile = max(8, _round_up(int(h_tile), 8))
    h_tile = max(h_tile, halo)                   # keeps halo offsets in-range
    n_bands = _cdiv(max(H, 1), h_tile)
    h_pad = _round_up(max(n_bands * h_tile, halo), h_tile)
    n_bands = h_pad // h_tile

    if (h_pad != H) or (w_pad != W):
        # Sentinel label `nclasses` maps to zero class bits in-kernel, so the
        # padding behaves exactly like conv2d zero-padding and never leaks.
        range_label = jnp.pad(range_label,
                              ((0, 0), (0, h_pad - H), (0, w_pad - W)),
                              constant_values=nclasses)

    in_bytes = jnp.dtype(range_label.dtype).itemsize
    plane_rows = h_tile + 2 * halo
    vmem_est = (2 * h_tile * w_pad * in_bytes          # band label double-buffer
                + 2 * h_tile * w_pad * 4               # f32 out double-buffer
                + 2 * halo * w_pad * in_bytes          # halo buffer
                + 10 * plane_rows * w_pad * 4)         # uint32 working planes
    vmem_limit = int(min(max(2 * vmem_est, 16 * 1024 * 1024), 48 * 1024 * 1024))

    cost = pl.CostEstimate(
        flops=int(B * h_pad * w_pad * (12 * border_size + 12)),
        transcendentals=0,
        bytes_accessed=int(B * h_pad * w_pad * (in_bytes + 4)
                           + B * n_bands * 2 * halo * w_pad * in_bytes))

    kern = functools.partial(
        _border_mask_kernel, nclasses=nclasses, border_size=border_size,
        kern_conn=kern_conn, background_class=background_class,
        h_tile=h_tile, halo=halo, n_bands=n_bands, h_pad=h_pad, img_w=W)

    out = pl.pallas_call(
        kern,
        out_shape=jax.ShapeDtypeStruct((B, 1, h_pad, w_pad), jnp.float32),
        grid=(B, n_bands),
        in_specs=[
            # Band labels: blocked, auto-pipelined.
            pl.BlockSpec((None, h_tile, w_pad), lambda b, t: (b, t, 0)),
            # Same label array, left in HBM for the manual halo DMAs.
            pl.BlockSpec(memory_space=pl.ANY),
        ],
        out_specs=pl.BlockSpec((None, None, h_tile, w_pad),
                               lambda b, t: (b, 0, t, 0)),
        scratch_shapes=[
            pltpu.VMEM((2, halo, w_pad), range_label.dtype),   # halo labels
            pltpu.SemaphoreType.DMA((2,)),
        ],
        compiler_params=pltpu.CompilerParams(
            dimension_semantics=("parallel", "parallel"),
            vmem_limit_bytes=vmem_limit),
        cost_estimate=cost,
    )(range_label, range_label)

    if (h_pad != H) or (w_pad != W):
        out = out[:, :, :H, :W]
    if must_unbatch:
        out = out[0]
    return out


# ---------------------------- pure-JAX reference ----------------------------
def border_mask_ref(range_label, *, nclasses, border_size, kern_conn=4,
                    background_class=None):
    must_unbatch = range_label.ndim != 3
    if must_unbatch:
        range_label = range_label[None, ...]
    x = jax.nn.one_hot(range_label.astype(jnp.int32), nclasses,
                       axis=1, dtype=jnp.float32)  # (B, C, H, W)
    if background_class is not None:
        bg = x[:, background_class]
        x = (x + bg[:, None]).at[:, background_class].set(bg)
    if kern_conn == 4:
        k2 = jnp.array([[0., 1., 0.], [1., 1., 1.], [0., 1., 0.]], jnp.float32)
    else:
        k2 = jnp.ones((3, 3), jnp.float32)
    ksum = k2.sum()
    kern = jnp.zeros((nclasses, 1, 3, 3), jnp.float32).at[:, 0].set(k2)
    for _ in range(border_size):
        y = lax.conv_general_dilated(
            x, kern, (1, 1), 'SAME',
            dimension_numbers=('NCHW', 'OIHW', 'NCHW'),
            feature_group_count=nclasses)
        x = (y == ksum).astype(jnp.float32)
    bodies = x.sum(1, keepdims=True) == 1.0
    if background_class is not None:
        bodies = bodies | (x[:, background_class:background_class + 1] == 1.0)
    borders = 1.0 - bodies.astype(jnp.float32)
    if must_unbatch:
        borders = borders[0]
    return borders


if __name__ == "__main__":
    key = jax.random.PRNGKey(0)
    k1, k2, k3 = jax.random.split(key, 3)

    nclasses = 4
    B, H, W = 2, 16, 128

    # Blocky deterministic label images (solid regions so erosion is non-trivial).
    coarse1 = jax.random.randint(k1, (B, H // 4, W // 16), 0, nclasses,
                                 dtype=jnp.int32)
    labels_b = jnp.repeat(jnp.repeat(coarse1, 4, axis=1), 16, axis=2)  # (B,H,W)

    coarse2 = jax.random.randint(k2, (H // 4, W // 16), 0, nclasses,
                                 dtype=jnp.int32)
    labels_u = jnp.repeat(jnp.repeat(coarse2, 4, axis=0), 16, axis=1)  # (H,W)

    # Case 1: batched input, single band per image, no background class,
    # 4-connectivity, 2 erosions.
    out1 = border_mask(labels_b, nclasses=nclasses, border_size=2, kern_conn=4)
    jax.block_until_ready(out1)
    ref1 = border_mask_ref(labels_b, nclasses=nclasses, border_size=2,
                           kern_conn=4)
    assert out1.shape == (B, 1, H, W)
    assert jnp.array_equal(out1, ref1), "mismatch vs reference (case 1)"

    # Case 2: unbatched [H, W] input; B == 1 plane is split into 2 halo-coupled
    # bands (exercises the halo DMA path); background class 0, 8-conn, 1 erosion.
    out2 = border_mask(labels_u, nclasses=nclasses, border_size=1, kern_conn=8,
                       background_class=0)
    jax.block_until_ready(out2)
    ref2 = border_mask_ref(labels_u, nclasses=nclasses, border_size=1,
                           kern_conn=8, background_class=0)
    assert out2.shape == (1, H, W)
    assert jnp.array_equal(out2, ref2), "mismatch vs reference (case 2)"

    # Case 3: int8 labels (narrow-dtype HBM passthrough), forced h_tile=8 so
    # each image is 2 bands even with B=2; background class, 4-connectivity.
    out3 = border_mask(labels_b.astype(jnp.int8), nclasses=nclasses,
                       border_size=1, kern_conn=4, background_class=0, h_tile=8)
    jax.block_until_ready(out3)
    ref3 = border_mask_ref(labels_b, nclasses=nclasses, border_size=1,
                           kern_conn=4, background_class=0)
    assert out3.shape == (B, 1, H, W)
    assert jnp.array_equal(out3, ref3), "mismatch vs reference (case 3)"

    # Case 4: float32 labels with no wrapper cast, W not a multiple of 128 and
    # H not a multiple of the tile (exercises lane/row padding), multi-band
    # border_size=2 halo, 8-connectivity, background class 2.
    nclasses4 = 5
    coarse3 = jax.random.randint(k3, (1, 6, 25), 0, nclasses4, dtype=jnp.int32)
    labels_f = jnp.repeat(jnp.repeat(coarse3, 4, axis=1), 4, axis=2)
    labels_f = labels_f.astype(jnp.float32)                   # (1, 24, 100)
    out4 = border_mask(labels_f, nclasses=nclasses4, border_size=2, kern_conn=8,
                       background_class=2)
    jax.block_until_ready(out4)
    ref4 = border_mask_ref(labels_f, nclasses=nclasses4, border_size=2,
                           kern_conn=8, background_class=2)
    assert out4.shape == (1, 1, 24, 100)
    assert jnp.array_equal(out4, ref4), "mismatch vs reference (case 4)"

    print("KERNEL_OK")
</pallas_src>

<mosaic_0001>
module attributes {stable_mosaic.version = 11 : i64} {
  func.func @_border_mask_kernel(%arg0: i32, %arg1: i32, %arg2: memref<1x16x128xi32, #tpu.memory_space<vmem>>, %arg3: memref<2x16x128xi32, #tpu.memory_space<any>>, %arg4: memref<1x1x16x128xf32, #tpu.memory_space<vmem>>, %arg5: memref<2x8x128xi32, #tpu.memory_space<vmem>>, %arg6: memref<2x!tpu.dma_semaphore, #tpu.memory_space<semaphore_mem>>) attributes {dimension_semantics = [#tpu.dimension_semantics<parallel>, #tpu.dimension_semantics<parallel>], iteration_bounds = array<i64: 2, 1>, scalar_prefetch = 0 : i64, scratch_operands = 2 : i64, tpu.core_type = #tpu.core_type<tc>, window_params = [{transform_indices = @transform_0, window_bounds = array<i64: 1, 16, 128>}, {}, {transform_indices = @transform_2, window_bounds = array<i64: 1, 1, 16, 128>}]} {
    %c0 = arith.constant 0 : index
    %c0_0 = arith.constant 0 : index
    %c0_1 = arith.constant 0 : index
    %0 = vector.load %arg2[%c0, %c0_0, %c0_1] : memref<1x16x128xi32, #tpu.memory_space<vmem>>, vector<1x16x128xi32>
    %1 = vector.shape_cast %0 : vector<1x16x128xi32> to vector<16x128xi32>
    %c0_i32 = arith.constant 0 : i32
    %2 = vector.broadcast %c0_i32 : i32 to vector<16x128xi32>
    %3 = arith.cmpi sge, %1, %2 : vector<16x128xi32>
    %c4_i32 = arith.constant 4 : i32
    %4 = vector.broadcast %c4_i32 : i32 to vector<16x128xi32>
    %5 = arith.cmpi slt, %1, %4 : vector<16x128xi32>
    %6 = arith.andi %3, %5 : vector<16x128xi1>
    %c0_i32_2 = arith.constant 0 : i32
    %c3_i32 = arith.constant 3 : i32
    %7 = vector.broadcast %c0_i32_2 : i32 to vector<16x128xi32>
    %8 = arith.maxsi %7, %1 : vector<16x128xi32>
    %9 = vector.broadcast %c3_i32 : i32 to vector<16x128xi32>
    %10 = arith.minsi %9, %8 : vector<16x128xi32>
    %c1_i32 = arith.constant 1 : i32
    %11 = vector.broadcast %c1_i32 : i32 to vector<16x128xi32>
    %12 = arith.shli %11, %10 : vector<16x128xi32>
    %c0_i32_3 = arith.constant 0 : i32
    %13 = vector.broadcast %c0_i32_3 : i32 to vector<16x128xi32>
    %14 = arith.select %6, %12, %13 : vector<16x128xi1>, vector<16x128xi32>
    %c0_i32_4 = arith.constant 0 : i32
    %15 = vector.broadcast %c0_i32_4 : i32 to vector<8x128xi32>
    %c0_i32_5 = arith.constant 0 : i32
    %16 = vector.broadcast %c0_i32_5 : i32 to vector<8x128xi32>
    %17 = tpu.concatenate %15, %14, %16 in 0 : vector<8x128xi32>, vector<16x128xi32>, vector<8x128xi32> -> vector<32x128xi32>
    %18 = tpu.iota {dimensions = array<i32: 1>} : vector<32x128xi32>
    %c1_i32_6 = arith.constant 1 : i32
    %19 = vector.broadcast %c1_i32_6 : i32 to vector<32x128xi32>
    %20 = arith.cmpi sge, %18, %19 : vector<32x128xi32>
    %c15_i32 = arith.constant 15 : i32
    %c0_i32_7 = arith.constant 0 : i32
    %21 = vector.broadcast %c15_i32 : i32 to vector<32x128xi32>
    %22 = vector.broadcast %c0_i32_7 : i32 to vector<32x128xi32>
    %23 = arith.select %20, %21, %22 : vector<32x128xi1>, vector<32x128xi32>
    %c127_i32 = arith.constant 127 : i32
    %24 = vector.broadcast %c127_i32 : i32 to vector<32x128xi32>
    %25 = arith.cmpi slt, %18, %24 : vector<32x128xi32>
    %c15_i32_8 = arith.constant 15 : i32
    %c0_i32_9 = arith.constant 0 : i32
    %26 = vector.broadcast %c15_i32_8 : i32 to vector<32x128xi32>
    %27 = vector.broadcast %c0_i32_9 : i32 to vector<32x128xi32>
    %28 = arith.select %25, %26, %27 : vector<32x128xi1>, vector<32x128xi32>
    %c1_i32_10 = arith.constant 1 : i32
    %29 = tpu.dynamic_rotate %17 by %c1_i32_10 dim 1 : vector<32x128xi32>, i32 -> vector<32x128xi32>
    %30 = arith.andi %29, %23 : vector<32x128xi32>
    %31 = arith.andi %17, %30 : vector<32x128xi32>
    %c127_i32_11 = arith.constant 127 : i32
    %32 = tpu.dynamic_rotate %17 by %c127_i32_11 dim 1 : vector<32x128xi32>, i32 -> vector<32x128xi32>
    %33 = arith.andi %32, %28 : vector<32x128xi32>
    %34 = arith.andi %31, %33 : vector<32x128xi32>
    %c1_i32_12 = arith.constant 1 : i32
    %35 = tpu.dynamic_rotate %17 by %c1_i32_12 dim 0 : vector<32x128xi32>, i32 -> vector<32x128xi32>
    %36 = arith.andi %34, %35 : vector<32x128xi32>
    %c31_i32 = arith.constant 31 : i32
    %37 = tpu.dynamic_rotate %17 by %c31_i32 dim 0 : vector<32x128xi32>, i32 -> vector<32x128xi32>
    %38 = arith.andi %36, %37 : vector<32x128xi32>
    %c1_i32_13 = arith.constant 1 : i32
    %39 = tpu.dynamic_rotate %38 by %c1_i32_13 dim 1 : vector<32x128xi32>, i32 -> vector<32x128xi32>
    %40 = arith.andi %39, %23 : vector<32x128xi32>
    %41 = arith.andi %38, %40 : vector<32x128xi32>
    %c127_i32_14 = arith.constant 127 : i32
    %42 = tpu.dynamic_rotate %38 by %c127_i32_14 dim 1 : vector<32x128xi32>, i32 -> vector<32x128xi32>
    %43 = arith.andi %42, %28 : vector<32x128xi32>
    %44 = arith.andi %41, %43 : vector<32x128xi32>
    %c1_i32_15 = arith.constant 1 : i32
    %45 = tpu.dynamic_rotate %38 by %c1_i32_15 dim 0 : vector<32x128xi32>, i32 -> vector<32x128xi32>
    %46 = arith.andi %44, %45 : vector<32x128xi32>
    %c31_i32_16 = arith.constant 31 : i32
    %47 = tpu.dynamic_rotate %38 by %c31_i32_16 dim 0 : vector<32x128xi32>, i32 -> vector<32x128xi32>
    %48 = arith.andi %46, %47 : vector<32x128xi32>
    %49 = vector.extract_strided_slice %48 {offsets = [8, 0], sizes = [16, 128], strides = [1, 1]} : vector<32x128xi32> to vector<16x128xi32>
    %c0_i32_17 = arith.constant 0 : i32
    %50 = vector.broadcast %c0_i32_17 : i32 to vector<16x128xi32>
    %51 = arith.cmpi ne, %49, %50 : vector<16x128xi32>
    %c1_i32_18 = arith.constant 1 : i32
    %52 = vector.broadcast %c1_i32_18 : i32 to vector<16x128xi32>
    %53 = arith.subi %49, %52 : vector<16x128xi32>
    %54 = arith.andi %49, %53 : vector<16x128xi32>
    %c0_i32_19 = arith.constant 0 : i32
    %55 = vector.broadcast %c0_i32_19 : i32 to vector<16x128xi32>
    %56 = arith.cmpi eq, %54, %55 : vector<16x128xi32>
    %57 = arith.andi %51, %56 : vector<16x128xi1>
    %cst = arith.constant 0.000000e+00 : f32
    %cst_20 = arith.constant 1.000000e+00 : f32
    %58 = vector.broadcast %cst : f32 to vector<16x128xf32>
    %59 = vector.broadcast %cst_20 : f32 to vector<16x128xf32>
    %60 = arith.select %57, %58, %59 : vector<16x128xi1>, vector<16x128xf32>
    %c0_21 = arith.constant 0 : index
    %c0_22 = arith.constant 0 : index
    %c0_23 = arith.constant 0 : index
    %c0_24 = arith.constant 0 : index
    %61 = vector.load %arg4[%c0_21, %c0_22, %c0_23, %c0_24] : memref<1x1x16x128xf32, #tpu.memory_space<vmem>>, vector<1x1x16x128xf32>
    %62 = vector.shape_cast %61 : vector<1x1x16x128xf32> to vector<16x128xf32>
    %63 = vector.shape_cast %60 : vector<16x128xf32> to vector<1x1x16x128xf32>
    tpu.vector_store %arg4[%c0_21, %c0_22, %c0_23, %c0_24], %63 {strides = array<i32>} : memref<1x1x16x128xf32, #tpu.memory_space<vmem>>, vector<1x1x16x128xf32>,
    return
  }
  func.func @transform_0(%arg0: i32, %arg1: i32) -> (i32, i32, i32) {
    %c0_i32 = arith.constant 0 : i32
    %c0_i32_0 = arith.constant 0 : i32
    return %arg0, %arg1, %c0_i32 : i32, i32, i32
  }
  func.func @transform_2(%arg0: i32, %arg1: i32) -> (i32, i32, i32, i32) {
    %c0_i32 = arith.constant 0 : i32
    %c0_i32_0 = arith.constant 0 : i32
    %c0_i32_1 = arith.constant 0 : i32
    return %arg0, %c0_i32, %arg1, %c0_i32_0 : i32, i32, i32, i32
  }
}

</mosaic_0001>

<llo_original>
// kernel: tpu_custom_call.1
$region0: #{tpu_custom_call.1}
  #allocation0 [shape = 'u32[]', space=smem, size = 0x4, offset = 0x4, fixed_abs, tag = 'smem constant byte address 0x4 - core index']
  #allocation1 [shape = 'u32[72,128]{1,0:T(1,128)}', space=vmem, size = 0x9000, scoped, tag = 'internal scratch']
  #allocation2 [shape = 's32[2,8,128]{2,1,0:T(8,128)}', space=vmem, size = 0x2000, scoped, tag = 'scratch operand']
  #allocation3 [shape = 's32[2]{0}', space=sflag, size = 0x8, scoped, tag = 'scratch operand']
  %s0 = inlined_call_operand.hbm [shape: s32[2,16,128], index: 0, kind: input, shape index: {}]
  %s1 = inlined_call_operand.hbm [shape: s32[2,16,128], index: 1, kind: input, shape index: {}]
  %s2 = inlined_call_operand.hbm [shape: f32[2,1,16,128], index: 2, kind: output, shape index: {}]
  %s3 = sld [smem:[#allocation0]]
  $region41: #{tpu_custom_call.1} parent=0
    _
  %s5 = ssub.s32 1, %s3
  %s6 = scalar_select 0, %s5, %s3
  $region1: #{tpu_custom_call.1} parent=0
    #allocation4 [shape = 'u8[16384]{0}', space=vmem, size = 0x4000, scoped, tag = 'input window, operand 0']
    #allocation5 [shape = 's32[2]{0}', space=sflag, size = 0x8, scoped, tag = 'scoped memory for tpu_custom_call.1']
    #allocation6 [shape = 's32[2]{0}', space=sflag, size = 0x8, scoped, tag = 'scoped memory for tpu_custom_call.1']
    #allocation7 [shape = 'u8[16384]{0}', space=vmem, size = 0x4000, scoped, tag = 'output window, operand 0']
    %7 = vsyncpa [#allocation5], 0
    %s8 = scalar_lea.sflag [#allocation5], 1
    %9 = vsyncpa %s8, 0
    %10 = vsyncpa [#allocation6], 0
    %s11 = scalar_lea.sflag [#allocation6], 1
    %12 = vsyncpa %s11, 0
    loop: start=0, step=1, limit=4
    $region2: #{tpu_custom_call.1} parent=1 // loop_pre_header
      _
    $region3: #{tpu_custom_call.1} parent=1 // loop_header
      %s14 = sphi 0, %s18
      %p15 = scmp.ge.s32.totalorder %s14, 4
      %s21 = sphi 0, %s33
      %s22 = sphi 0, %s29
      %s23 = sphi 0, %s21
      %s24 = sphi 0, %s22
      %s25 = sphi 0, %s23
      %s26 = sphi 0, %s24
      %s38 = sphi 0, %s40
      %s41 = sphi 0, %s38
      %s42 = sphi 0, %s41
      %s58 = sphi 0, %s42
      %s66 = sphi 0, %s68
      %s69 = sphi 0, %s66
      %s70 = sphi 0, %s69
      %s86 = sphi 0, %s70
    $region4: #{tpu_custom_call.1} parent=1 // loop_header_branch
      %17 = sbr.rel (%p15) target = $region8
    $region5: #{tpu_custom_call.1} parent=1 // loop_body
      %s19 = ssub.s32 %s14, 1
      %s20 = ssub.s32 %s14, 2
      %s27 = sadd.s32 1, %s22
      %p28 = scmp.ge.s32.totalorder %s27, 1
      %s29 = scalar_select %p28, 0, %s27
      %s30 = sadd.s32 1, %s21
      %s31 = scalar_select %p28, %s30, %s21
      %p32 = scmp.ge.s32.totalorder %s31, 2
      %s33 = scalar_select %p32, 0, %s31
      %s34 = ssub.s32 %s21, %s33
      %s35 = ssub.s32 %s22, %s29
      %s36 = sor.u32 %s34, %s35
      %p37 = scmp.eq.s32.totalorder %s36, 0
      %s39 = sadd.s32 %s38, 1
      %s40 = scalar_select %p37, %s38, %s39
      %p43 = pneg %p37
      %p44 = scmp.eq.s32.totalorder %s14, 1
      %p45 = por %p43, %p44
      %p46 = scmp.ne.s32.totalorder %s38, %s41
      %p47 = scmp.eq.s32.totalorder %s14, 0
      %p48 = por %p46, %p47
      %p49 = scmp.ne.s32.totalorder %s38, %s41
      %p50 = scmp.eq.s32.totalorder %s19, 1
      %p51 = por %p49, %p50
      %p52 = scmp.ne.s32.totalorder %s41, %s42
      %p53 = scmp.eq.s32.totalorder %s19, 0
      %p54 = por %p52, %p53
      %p55 = scmp.ne.s32.totalorder %s41, %s42
      %p56 = scmp.eq.s32.totalorder %s20, 1
      %p57 = por %p55, %p56
      %p59 = scmp.ne.s32.totalorder %s42, %s58
      %p60 = scmp.eq.s32.totalorder %s20, 0
      %p61 = por %p59, %p60
      %s62 = ssub.s32 %s21, %s33
      %s63 = ssub.s32 %s22, %s29
      %s64 = sor.u32 %s62, %s63
      %p65 = scmp.eq.s32.totalorder %s64, 0
      %s67 = sadd.s32 %s66, 1
      %s68 = scalar_select %p65, %s66, %s67
      %p71 = pneg %p65
      %p72 = scmp.eq.s32.totalorder %s14, 1
      %p73 = por %p71, %p72
      %p74 = scmp.ne.s32.totalorder %s66, %s69
      %p75 = scmp.eq.s32.totalorder %s14, 0
      %p76 = por %p74, %p75
      %p77 = scmp.ne.s32.totalorder %s66, %s69
      %p78 = scmp.eq.s32.totalorder %s19, 1
      %p79 = por %p77, %p78
      %p80 = scmp.ne.s32.totalorder %s69, %s70
      %p81 = scmp.eq.s32.totalorder %s19, 0
      %p82 = por %p80, %p81
      %p83 = scmp.ne.s32.totalorder %s69, %s70
      %p84 = scmp.eq.s32.totalorder %s20, 1
      %p85 = por %p83, %p84
      %p87 = scmp.ne.s32.totalorder %s70, %s86
      %p88 = scmp.eq.s32.totalorder %s20, 0
      %p89 = por %p87, %p88
      %p90 = scmp.le.s32.totalorder 1, %s14
      %p91 = scmp.lt.s32.totalorder %s14, 3
      %p92 = pnand %p90, %p91
      %p93 = pneg %p92
      // Predicated region
      $region9: #{tpu_custom_call.1} parent=5 // pred_check
        _
      $region10: #{tpu_custom_call.1} parent=5 // pred_check_branch
        %95 = sbr.rel (%p92) target = $region12
      $region11: #{tpu_custom_call.1} parent=5 // pred_region
        %s96 = ssub.s32 %s14, 1
      $region12: #{tpu_custom_call.1} parent=5 // pred_fallthru
        _
      %p97 = scmp.lt.s32.totalorder %s14, 2
      // Predicated region
      $region13: #{tpu_custom_call.1} parent=5 // pred_check
        %p98 = pneg %p97
      $region14: #{tpu_custom_call.1} parent=5 // pred_check_branch
        %100 = sbr.rel (%p98) target = $region16
      $region15: #{tpu_custom_call.1} parent=5 // pred_region
        // Predicated region
        $region17: #{tpu_custom_call.1} parent=15 // pred_check
          %p101 = pneg %p48
        $region18: #{tpu_custom_call.1} parent=15 // pred_check_branch
          %103 = sbr.rel (%p101) target = $region20
        $region19: #{tpu_custom_call.1} parent=15 // pred_region
          %s104 = sand.u32 %s38, 1
          %s105 = scalar_lea.sflag [#allocation5], %s104
          %s106 = sand.u32 %s38, 1
          %s107 = smul.addr %s106, 16
          %s108 = scalar_lea.vmem [#allocation4], %s107
          %s109 = smul.u32 2, %s22
          %111 = vsyncadd %s105, 0
          %s112 = smul.addr %s21, 2
          %s113 = sadd.s32 %s109, %s112
          %s114 = smul.addr %s113, 8
          %s115 = scalar_lea.hbm %s0, %s114
          %s116 = sshll.u32 %s115, 4
          %s117 = int_to_ptr.hbm [resolvable:$true] %s116
          %s118 = sshll.u32 %s108, 4
          %s119 = int_to_ptr.vmem [resolvable:$true] %s118
          %124 = dma.hbm_to_vmem [thread:$0]  %s117, 256, %s119, %s105, 128, 128, 8
        $region20: #{tpu_custom_call.1} parent=15 // pred_fallthru
          _
      $region16: #{tpu_custom_call.1} parent=5 // pred_fallthru
        _
      %p125 = scmp.le.s32.totalorder 1, %s14
      %p126 = scmp.lt.s32.totalorder %s14, 3
      %p127 = pnand %p125, %p126
      %p128 = pneg %p127
      // Predicated region
      $region21: #{tpu_custom_call.1} parent=5 // pred_check
        _
      $region22: #{tpu_custom_call.1} parent=5 // pred_check_branch
        %130 = sbr.rel (%p127) target = $region24
      $region23: #{tpu_custom_call.1} parent=5 // pred_region
        %s131 = ssub.s32 %s14, 1
        %s132 = sand.u32 %s41, 1
        %s133 = scalar_lea.sflag [#allocation5], %s132
        %s134 = sand.u32 %s41, 1
        %s135 = smul.addr %s134, 16
        %s136 = scalar_lea.vmem [#allocation4], %s135
        // Predicated region
        $region25: #{tpu_custom_call.1} parent=23 // pred_check
          %p137 = pneg %p54
        $region26: #{tpu_custom_call.1} parent=23 // pred_check_branch
          %139 = sbr.rel (%p137) target = $region28
        $region27: #{tpu_custom_call.1} parent=23 // pred_region
          %141 = dma.done %s133, 256
        $region28: #{tpu_custom_call.1} parent=23 // pred_fallthru
          _
        %s142 = sand.u32 %s41, 1
        %s143 = scalar_lea.sflag [#allocation5], %s142
        %s144 = sand.u32 %s41, 1
        %s145 = smul.addr %s144, 16
        %s146 = scalar_lea.vmem [#allocation4], %s145
        %p147 = pneg %p54
        %p148 = pneg %p51
        %p149 = pneg %p82
        %p150 = pneg %p79
        %s151 = sand.u32 %s69, 1
        %s152 = scalar_lea.sflag [#allocation6], %s151
        %s153 = sand.u32 %s69, 1
        %s154 = smul.addr %s153, 16
        %s155 = scalar_lea.vmem [#allocation7], %s154
        %s156 = smul.u32 2, %s24
        %s157 = smul.u32 2, %s24
        %v158 = vld [vmem:[%s136] sm:$0xff]
        %v159 = vld [vmem:[%s136 + $0x8] sm:$0xff]
        %vm160 = vcmp.ge.s32.totalorder %v158, 0
        %vm161 = vcmp.ge.s32.totalorder %v159, 0
        %vm162 = vcmp.lt.s32.totalorder %v158, 4
        %vm163 = vcmp.lt.s32.totalorder %v159, 4
        %vm164 = vmand %vm160, %vm162
        %vm165 = vmand %vm161, %vm163
        %vm166 = vcmp.gt.s32.totalorder %v158, 0
        %v167 = vsel %vm166, %v158, 0
        %vm168 = vcmp.gt.s32.totalorder %v159, 0
        %v169 = vsel %vm168, %v159, 0
        %vm170 = vcmp.lt.s32.totalorder %v167, 3
        %v171 = vsel %vm170, %v167, 3
        %vm172 = vcmp.lt.s32.totalorder %v169, 3
        %v173 = vsel %vm172, %v169, 3
        %v174 = vshll.u32 1, %v171
        %v175 = vshll.u32 1, %v173
        %v176 = vsel %vm164, %v174, 0
        %v177 = vsel %vm165, %v175, 0
        %v178 = vlaneseq
        %v179 = vand.u32 %v178, 127
        %vm180 = vcmp.ge.s32.totalorder %v179, 1
        %v181 = vsel %vm180, 15, 0
        %vm182 = vcmp.lt.s32.totalorder %v179, 127
        %v183 = vsel %vm182, 15, 0
        %184 = vrot.lane.b32.xlu0 %v176, 1
        %v185 = vpop.permute.xlu0 %184
        %186 = vrot.lane.b32.xlu0 %v177, 1
        %v187 = vpop.permute.xlu0 %186
        %v188 = vand.u32 %v185, %v181
        %v189 = vand.u32 %v187, %v181
        %v190 = vand.u32 %v176, %v188
        %v191 = vand.u32 %v177, %v189
        %192 = vrot.lane.b32.xlu0 %v176, 127
        %v193 = vpop.permute.xlu0 %192
        %194 = vrot.lane.b32.xlu0 %v177, 127
        %v195 = vpop.permute.xlu0 %194
        %v196 = vand.u32 %v193, %v183
        %v197 = vand.u32 %v195, %v183
        %v198 = vand.u32 %v190, %v196
        %v199 = vand.u32 %v191, %v197
        %v200 = vrot.slane %v176, 7
        %v201 = vrot.slane %v177, 7
        %v202 = vlaneseq
        %v203 = vshrl.u32 %v202, 7
        %vm204 = vcmp.lt.s32.totalorder %v203, 1
        %v205 = vsel %vm204, %v200, %v201
        %v206 = vsel %vm204, 0, %v200
        %v207 = vand.u32 %v198, %v206
        %v208 = vand.u32 %v199, %v205
        %v209 = vrot.slane %v176, 1
        %v210 = vrot.slane %v177, 1
        %vm211 = vcmp.lt.s32.totalorder %v203, 7
        %v212 = vsel %vm211, %v210, 0
        %v213 = vsel %vm211, %v209, %v210
        %v214 = vand.u32 %v207, %v213
        %v215 = vand.u32 %v208, %v212
        %216 = vrot.lane.b32.xlu0 %v214, 1
        %v217 = vpop.permute.xlu0 %216
        %218 = vrot.lane.b32.xlu0 %v215, 1
        %v219 = vpop.permute.xlu0 %218
        %v220 = vand.u32 %v217, %v181
        %v221 = vand.u32 %v219, %v181
        %v222 = vand.u32 %v214, %v220
        %v223 = vand.u32 %v215, %v221
        %224 = vrot.lane.b32.xlu0 %v214, 127
        %v225 = vpop.permute.xlu0 %224
        %226 = vrot.lane.b32.xlu0 %v215, 127
        %v227 = vpop.permute.xlu0 %226
        %v228 = vand.u32 %v225, %v183
        %v229 = vand.u32 %v227, %v183
        %v230 = vand.u32 %v222, %v228
        %v231 = vand.u32 %v223, %v229
        %v232 = vrot.slane %v214, 7
        %v233 = vrot.slane %v215, 7
        %v234 = vsel %vm204, %v232, %v233
        %v235 = vsel %vm204, 0, %v232
        %v236 = vand.u32 %v230, %v235
        %v237 = vand.u32 %v231, %v234
        %v238 = vrot.slane %v214, 1
        %v239 = vrot.slane %v215, 1
        %v240 = vsel %vm211, %v239, 0
        %v241 = vsel %vm211, %v238, %v239
        %v242 = vand.u32 %v236, %v241
        %v243 = vand.u32 %v237, %v240
        %vm244 = vcmp.ne.s32.totalorder %v242, 0
        %vm245 = vcmp.ne.s32.totalorder %v243, 0
        %v246 = vsub.s32 %v242, 1
        %v247 = vsub.s32 %v243, 1
        %v248 = vand.u32 %v242, %v246
        %v249 = vand.u32 %v243, %v247
        %vm250 = vcmp.eq.s32.totalorder %v248, 0
        %vm251 = vcmp.eq.s32.totalorder %v249, 0
        %vm252 = vmand %vm244, %vm250
        %vm253 = vmand %vm245, %vm251
        %v254 = vsel %vm252, 0.0, 1.0
        %v255 = vsel %vm253, 0.0, 1.0
        %256 = vst [vmem:[%s155] sm:$0xff] %v254
        %257 = vst [vmem:[%s155 + $0x8] sm:$0xff] %v255
        %s258 = sand.u32 %s69, 1
        %s259 = scalar_lea.sflag [#allocation6], %s258
        %s260 = sand.u32 %s69, 1
        %s261 = smul.addr %s260, 16
        %s262 = scalar_lea.vmem [#allocation7], %s261
        // Predicated region
        $region29: #{tpu_custom_call.1} parent=23 // pred_check
          %p263 = pneg %p79
        $region30: #{tpu_custom_call.1} parent=23 // pred_check_branch
          %265 = sbr.rel (%p263) target = $region32
        $region31: #{tpu_custom_call.1} parent=23 // pred_region
          %s266 = smul.u32 2, %s24
          %268 = vsyncadd %s259, 0
          %s269 = smul.addr %s23, 2
          %s270 = sadd.s32 %s266, %s269
          %s271 = smul.addr %s270, 8
          %s272 = scalar_lea.hbm %s2, %s271
          %s273 = sshll.u32 %s262, 4
          %s274 = int_to_ptr.vmem [resolvable:$true] %s273
          %s275 = sshll.u32 %s272, 4
          %s276 = int_to_ptr.hbm [resolvable:$true] %s275
          %281 = dma.vmem_to_hbm [thread:$0]  %s274, 256, %s276, %s259, 128, 128, 8
        $region32: #{tpu_custom_call.1} parent=23 // pred_fallthru
          _
      $region24: #{tpu_custom_call.1} parent=5 // pred_fallthru
        _
      %p282 = scmp.le.s32.totalorder 2, %s14
      // Predicated region
      $region33: #{tpu_custom_call.1} parent=5 // pred_check
        %p283 = pneg %p282
      $region34: #{tpu_custom_call.1} parent=5 // pred_check_branch
        %285 = sbr.rel (%p283) target = $region36
      $region35: #{tpu_custom_call.1} parent=5 // pred_region
        %s286 = ssub.s32 %s14, 2
        // Predicated region
        $region37: #{tpu_custom_call.1} parent=35 // pred_check
          %p287 = pneg %p85
        $region38: #{tpu_custom_call.1} parent=35 // pred_check_branch
          %289 = sbr.rel (%p287) target = $region40
        $region39: #{tpu_custom_call.1} parent=35 // pred_region
          %s290 = sand.u32 %s70, 1
          %s291 = scalar_lea.sflag [#allocation6], %s290
          %s292 = sand.u32 %s70, 1
          %s293 = smul.addr %s292, 16
          %s294 = scalar_lea.vmem [#allocation7], %s293
          %296 = dma.done %s291, 256
        $region40: #{tpu_custom_call.1} parent=35 // pred_fallthru
          _
      $region36: #{tpu_custom_call.1} parent=5 // pred_fallthru
        _
    $region6: #{tpu_custom_call.1} parent=1 // loop_footer
      %s18 = sadd.s32 1, %s14
    $region7: #{tpu_custom_call.1} parent=1 // loop_footer_branch
      %13 = sbr.rel target = $region3
    $region8: #{tpu_custom_call.1} parent=1 // loop_exit
      _
    %297 = vsyncpa [#allocation5], 1
    %s298 = scalar_lea.sflag [#allocation5], 1
    %299 = vsyncpa %s298, 1
    %300 = vsyncpa [#allocation6], 1
    %s301 = scalar_lea.sflag [#allocation6], 1
    %302 = vsyncpa %s301, 1
  %303 = vsyncmov [#allocation3]
  %s304 = vpop.sfrf %303
  %p305 = scmp.eq.s32.totalorder %s304, 0
  %p306 = pneg %p305
  %308 = shalt.err (%p306)
  %s309 = scalar_lea.sflag [#allocation3], 1
  %310 = vsyncmov %s309
  %s311 = vpop.sfrf %310
  %p312 = scmp.eq.s32.totalorder %s311, 0
  %p313 = pneg %p312
  %315 = shalt.err (%p313)

</llo_original>
